<compile_context>
chip_gen: v7x
topology: tpu7x:2x2x1
jax: 0.10.0
libtpu: 0.0.40
codegen_flags: <defaults>
</compile_context>

<pallas_src>
import functools

import jax
import jax.numpy as jnp
import numpy as np
from jax.experimental import pallas as pl
from jax.experimental.pallas import tpu as pltpu


@functools.lru_cache(maxsize=None)
def _vmem_limit_bytes():
    """Generation-aware scoped-VMEM cap, leaving headroom for compiler temporaries."""
    cap = 64 * 1024 * 1024                      # conservative default (v7x per-core VMEM)
    try:
        cap = int(pltpu.get_tpu_info().vmem_capacity_bytes)
    except Exception:                           # interpret mode / older runtime: keep default
        pass
    return int(max(32 * 1024 * 1024, min(cap - 16 * 1024 * 1024, 96 * 1024 * 1024)))


@functools.lru_cache(maxsize=None)
def _bilinear_matrix(dout, din):
    """Row-stochastic matrix matching F.interpolate(mode='bilinear', align_corners=False)."""
    scale = din / dout
    i = np.arange(dout, dtype=np.float64)
    src = np.maximum((i + 0.5) * scale - 0.5, 0.0)
    i0 = np.minimum(np.floor(src).astype(np.int64), din - 1)
    i1 = np.minimum(i0 + 1, din - 1)
    w1 = (src - i0).astype(np.float32)
    w0 = 1.0 - w1
    m = np.zeros((dout, din), np.float32)
    m[np.arange(dout), i0] += w0
    m[np.arange(dout), i1] += w1
    return m


def _interp_kernel(x_ref, wwt_ref, wh_ref, o_ref, u_ref):
    # x_ref  : (bc, Hin, Win)   input planes in their native dtype (N*C on axis 0)
    # wwt_ref: (Win, Wout)      width interpolation matrix, transposed (f32)
    # wh_ref : (th, Hin)        row tile of the height interpolation matrix (f32)
    # o_ref  : (bc, th, Wout)   output tile in the caller's dtype; lane axis = Wout
    # u_ref  : (bc, Hin, Wout)  VMEM scratch: width-interpolated planes (f32)
    bc = x_ref.shape[0]

    # Width pass: computed once per plane block.  The row-tile axis (grid axis 1) is
    # innermost and 'arbitrary', so the scratch stays valid for every row tile of the
    # current plane block — no duplicated MXU work across j.
    @pl.when(pl.program_id(1) == 0)
    def _():
        wwt = wwt_ref[...]

        @pl.loop(0, bc)
        def _(b):
            u_ref[b] = jnp.dot(x_ref[b].astype(jnp.float32), wwt,
                               preferred_element_type=jnp.float32)

    # Height pass for this row tile; store straight in the output dtype (bounded live
    # ranges: each plane's result is produced and stored inside the loop body).
    wh = wh_ref[...]

    @pl.loop(0, bc)
    def _(b):
        o_ref[b] = jnp.dot(wh, u_ref[b],
                           preferred_element_type=jnp.float32).astype(o_ref.dtype)


def _pick_tiles(nc, hin, win, hout, wout, itemsize):
    """Choose (row tile th, plane block bc) against the scoped-VMEM budget."""
    budget = int(_vmem_limit_bytes() * 0.6)     # headroom for weights / compiler temps

    def per_plane_bytes(th):
        # double-buffered output + input blocks, plus the single-buffered f32 U scratch
        return 2 * (th * wout * itemsize + hin * win * itemsize) + hin * wout * 4

    if per_plane_bytes(hout) <= budget:
        th = hout                               # whole output plane per block (single j step)
    else:
        th = hout
        cands = [t for t in range(8, hout, 8) if hout % t == 0]
        fitting = [t for t in cands if per_plane_bytes(t) <= budget]
        if fitting:
            th = max(fitting)
        elif cands:
            th = min(cands)

    cap_par = nc if nc < 2 else nc // 2         # keep >= 2 'parallel' steps for v7x's 2 TCs
    cap_vmem = max(1, budget // per_plane_bytes(th))
    cap = max(1, min(cap_par, cap_vmem))
    bc = 1
    for d in range(1, cap + 1):                 # largest divisor of nc: no output pad/slice
        if nc % d == 0:
            bc = d
    return th, bc


@functools.lru_cache(maxsize=None)
def _make_interp_call(nc, bc, hin, win, hout, wout, th, out_dtype):
    itemsize = np.dtype(out_dtype).itemsize
    # Advisory cost hint: the kernel is HBM-writeback bound (output dominates bytes).
    cost = pl.CostEstimate(
        flops=2 * nc * hin * wout * (win + hout),
        transcendentals=0,
        bytes_accessed=nc * (hin * win + hout * wout) * itemsize
        + (hout * hin + win * wout) * 4,
    )
    return pl.pallas_call(
        _interp_kernel,
        out_shape=jax.ShapeDtypeStruct((nc, hout, wout), out_dtype),
        grid=(nc // bc, hout // th),
        in_specs=[
            pl.BlockSpec((bc, hin, win), lambda i, j: (i, 0, 0)),
            pl.BlockSpec((win, wout), lambda i, j: (0, 0)),
            pl.BlockSpec((th, hin), lambda i, j: (j, 0)),
        ],
        out_specs=pl.BlockSpec((bc, th, wout), lambda i, j: (i, j, 0)),
        scratch_shapes=[pltpu.VMEM((bc, hin, wout), jnp.float32)],
        compiler_params=pltpu.CompilerParams(
            dimension_semantics=("parallel", "arbitrary"),
            vmem_limit_bytes=_vmem_limit_bytes(),
        ),
        cost_estimate=cost,
    )


@functools.partial(jax.jit, static_argnames=("size", "mode"))
def interpolate_forward(x, size, mode="bilinear"):
    """Pallas TPU equivalent of Interpolate(size, mode).forward(x); x is NCHW."""
    if mode != "bilinear":
        raise NotImplementedError(f"mode={mode!r} not implemented")
    if x.ndim != 4:
        raise ValueError("expected NCHW input")
    if x.dtype not in (np.dtype(np.float32), np.dtype(jnp.bfloat16), np.dtype(np.float16)):
        raise NotImplementedError(f"dtype {x.dtype} not supported")

    n, c, hin, win = x.shape
    hout, wout = size
    nc = n * c

    th, bc = _pick_tiles(nc, hin, win, hout, wout, np.dtype(x.dtype).itemsize)

    xf = x.reshape(nc, hin, win)                       # native dtype; no wrapper cast
    wh = jnp.asarray(_bilinear_matrix(hout, hin))      # (Hout, Hin) f32
    wwt = jnp.asarray(_bilinear_matrix(wout, win).T)   # (Win,  Wout) f32

    out = _make_interp_call(nc, bc, hin, win, hout, wout, th, np.dtype(x.dtype))(xf, wwt, wh)
    return out.reshape(n, c, hout, wout)


if __name__ == "__main__":
    key = jax.random.PRNGKey(0)
    x = jax.random.normal(key, (2, 4, 16, 16), jnp.float32)   # small NCHW input
    size = (224, 224)   # the size used by the original model's Interpolate module

    out = jax.block_until_ready(interpolate_forward(x, size=size, mode="bilinear"))
    assert out.shape == (2, 4, 224, 224), out.shape
    assert out.dtype == x.dtype
    assert bool(jnp.all(jnp.isfinite(out)))

    # Reference: the same separable bilinear weights applied with a plain XLA einsum.
    wh = jnp.asarray(_bilinear_matrix(224, 16))
    ww = jnp.asarray(_bilinear_matrix(224, 16))
    ref = jnp.einsum("oh,nchw,pw->ncop", wh, x, ww,
                     precision=jax.lax.Precision.HIGHEST)
    np.testing.assert_allclose(np.asarray(out), np.asarray(ref), rtol=1e-3, atol=1e-3)

    # bf16 path: the output is written in the caller's dtype straight from the kernel.
    xb = x.astype(jnp.bfloat16)
    outb = jax.block_until_ready(interpolate_forward(xb, size=size, mode="bilinear"))
    assert outb.shape == (2, 4, 224, 224) and outb.dtype == jnp.bfloat16
    assert bool(jnp.all(jnp.isfinite(outb.astype(jnp.float32))))

    print("KERNEL_OK")
</pallas_src>

<mosaic_0001>
module attributes {stable_mosaic.version = 11 : i64} {
  func.func @_interp_kernel(%arg0: i32, %arg1: i32, %arg2: memref<4x16x16xf32, #tpu.memory_space<vmem>>, %arg3: memref<16x224xf32, #tpu.memory_space<vmem>>, %arg4: memref<224x16xf32, #tpu.memory_space<vmem>>, %arg5: memref<4x224x224xf32, #tpu.memory_space<vmem>>, %arg6: memref<4x16x224xf32, #tpu.memory_space<vmem>>) attributes {dimension_semantics = [#tpu.dimension_semantics<parallel>, #tpu.dimension_semantics<arbitrary>], iteration_bounds = array<i64: 2, 1>, scalar_prefetch = 0 : i64, scratch_operands = 1 : i64, tpu.core_type = #tpu.core_type<tc>, window_params = [{transform_indices = @transform_0, window_bounds = array<i64: 4, 16, 16>}, {pipeline_mode = #tpu.pipeline_mode<synchronous>, transform_indices = @transform_1, window_bounds = array<i64: 16, 224>}, {transform_indices = @transform_2, window_bounds = array<i64: 224, 16>}, {transform_indices = @transform_3, window_bounds = array<i64: 4, 224, 224>}]} {
    %c0_i32 = arith.constant 0 : i32
    %0 = arith.cmpi eq, %arg1, %c0_i32 : i32
    %1 = arith.extui %0 : i1 to i32
    %c0_i32_0 = arith.constant 0 : i32
    %2 = arith.cmpi ne, %1, %c0_i32_0 : i32
    scf.if %2 {
      %c0_4 = arith.constant 0 : index
      %c0_5 = arith.constant 0 : index
      %5 = vector.load %arg3[%c0_4, %c0_5] : memref<16x224xf32, #tpu.memory_space<vmem>>, vector<16x224xf32>
      %c0_i32_6 = arith.constant 0 : i32
      %c4_i32_7 = arith.constant 4 : i32
      %6 = arith.addi %c0_i32_6, %c4_i32_7 : i32
      %c1_i32_8 = arith.constant 1 : i32
      scf.for %arg7 = %c0_i32_6 to %6 step %c1_i32_8  : i32 {
        %c1_i32_10 = arith.constant 1 : i32
        %7 = arith.muli %arg7, %c1_i32_10 : i32
        %c0_i32_11 = arith.constant 0 : i32
        %8 = arith.addi %c0_i32_11, %7 : i32
        %9 = arith.index_cast %8 : i32 to index
        %c0_12 = arith.constant 0 : index
        %c0_13 = arith.constant 0 : index
        %10 = vector.load %arg2[%9, %c0_12, %c0_13] : memref<4x16x16xf32, #tpu.memory_space<vmem>>, vector<1x16x16xf32>
        %11 = vector.shape_cast %10 : vector<1x16x16xf32> to vector<16x16xf32>
        %cst = arith.constant dense<0.000000e+00> : vector<16x224xf32>
        %12 = tpu.matmul %11, %5, %cst {dimension_numbers = #tpu.dot_dimension_numbers<[1], [0], [0], [1], [0, 0, 1, 1], [], []>} : vector<16x16xf32>, vector<16x224xf32>, vector<16x224xf32> -> vector<16x224xf32>
        %13 = arith.index_cast %8 : i32 to index
        %c0_14 = arith.constant 0 : index
        %c0_15 = arith.constant 0 : index
        %14 = vector.load %arg6[%13, %c0_14, %c0_15] : memref<4x16x224xf32, #tpu.memory_space<vmem>>, vector<1x16x224xf32>
        %15 = vector.shape_cast %14 : vector<1x16x224xf32> to vector<16x224xf32>
        %16 = vector.shape_cast %12 : vector<16x224xf32> to vector<1x16x224xf32>
        tpu.vector_store %arg6[%13, %c0_14, %c0_15], %16 {strides = array<i32>} : memref<4x16x224xf32, #tpu.memory_space<vmem>>, vector<1x16x224xf32>,
      }
      %c4_i32_9 = arith.constant 4 : i32
    } else {
    }
    %c0 = arith.constant 0 : index
    %c0_1 = arith.constant 0 : index
    %3 = vector.load %arg4[%c0, %c0_1] : memref<224x16xf32, #tpu.memory_space<vmem>>, vector<224x16xf32>
    %c0_i32_2 = arith.constant 0 : i32
    %c4_i32 = arith.constant 4 : i32
    %4 = arith.addi %c0_i32_2, %c4_i32 : i32
    %c1_i32 = arith.constant 1 : i32
    scf.for %arg7 = %c0_i32_2 to %4 step %c1_i32  : i32 {
      %c1_i32_4 = arith.constant 1 : i32
      %5 = arith.muli %arg7, %c1_i32_4 : i32
      %c0_i32_5 = arith.constant 0 : i32
      %6 = arith.addi %c0_i32_5, %5 : i32
      %7 = arith.index_cast %6 : i32 to index
      %c0_6 = arith.constant 0 : index
      %c0_7 = arith.constant 0 : index
      %8 = vector.load %arg6[%7, %c0_6, %c0_7] : memref<4x16x224xf32, #tpu.memory_space<vmem>>, vector<1x16x224xf32>
      %9 = vector.shape_cast %8 : vector<1x16x224xf32> to vector<16x224xf32>
      %cst = arith.constant dense<0.000000e+00> : vector<224x224xf32>
      %10 = tpu.matmul %3, %9, %cst {dimension_numbers = #tpu.dot_dimension_numbers<[1], [0], [0], [1], [0, 0, 1, 1], [], []>} : vector<224x16xf32>, vector<16x224xf32>, vector<224x224xf32> -> vector<224x224xf32>
      %11 = arith.index_cast %6 : i32 to index
      %c0_8 = arith.constant 0 : index
      %c0_9 = arith.constant 0 : index
      %12 = vector.load %arg5[%11, %c0_8, %c0_9] : memref<4x224x224xf32, #tpu.memory_space<vmem>>, vector<1x224x224xf32>
      %13 = vector.shape_cast %12 : vector<1x224x224xf32> to vector<224x224xf32>
      %14 = vector.shape_cast %10 : vector<224x224xf32> to vector<1x224x224xf32>
      tpu.vector_store %arg5[%11, %c0_8, %c0_9], %14 {strides = array<i32>} : memref<4x224x224xf32, #tpu.memory_space<vmem>>, vector<1x224x224xf32>,
    }
    %c4_i32_3 = arith.constant 4 : i32
    return
  }
  func.func @transform_0(%arg0: i32, %arg1: i32) -> (i32, i32, i32) {
    %c0_i32 = arith.constant 0 : i32
    %c0_i32_0 = arith.constant 0 : i32
    %c0_i32_1 = arith.constant 0 : i32
    return %arg0, %c0_i32, %c0_i32_0 : i32, i32, i32
  }
  func.func @transform_1(%arg0: i32, %arg1: i32) -> (i32, i32) {
    %c0_i32 = arith.constant 0 : i32
    %c0_i32_0 = arith.constant 0 : i32
    %c0_i32_1 = arith.constant 0 : i32
    return %c0_i32, %c0_i32_0 : i32, i32
  }
  func.func @transform_2(%arg0: i32, %arg1: i32) -> (i32, i32) {
    %c0_i32 = arith.constant 0 : i32
    %c0_i32_0 = arith.constant 0 : i32
    return %arg1, %c0_i32 : i32, i32
  }
  func.func @transform_3(%arg0: i32, %arg1: i32) -> (i32, i32, i32) {
    %c0_i32 = arith.constant 0 : i32
    %c0_i32_0 = arith.constant 0 : i32
    return %arg0, %arg1, %c0_i32 : i32, i32, i32
  }
}

</mosaic_0001>

<llo_original>
// kernel: interpolate_forward.1
$region0: #{interpolate_forward.1}
  #allocation0 [shape = 'u32[]', space=smem, size = 0x4, offset = 0x4, fixed_abs, tag = 'smem constant byte address 0x4 - core index']
  #allocation1 [shape = 'u32[144,128]{1,0:T(1,128)}', space=vmem, size = 0x12000, scoped, tag = 'internal scratch']
  #allocation2 [shape = 'f32[4,16,224]{2,1,0:T(8,128)}', space=vmem, size = 0x10000, scoped, tag = 'scratch operand']
  %s0 = inlined_call_operand.hbm [shape: f32[8,16,16], index: 0, kind: input, shape index: {}]
  %s1 = inlined_call_operand.hbm [shape: f32[16,224], index: 1, kind: input, shape index: {}]
  %s2 = inlined_call_operand.hbm [shape: f32[224,16], index: 2, kind: input, shape index: {}]
  %s3 = inlined_call_operand.hbm [shape: f32[8,224,224], index: 3, kind: output, shape index: {}]
  %s4 = sld [smem:[#allocation0]]
  $region75: #{interpolate_forward.1} parent=0
    _
  %s6 = ssub.s32 1, %s4
  %s7 = scalar_select 0, %s6, %s4
  $region1: #{interpolate_forward.1} parent=0
    #allocation3 [shape = 'u8[65536]{0}', space=vmem, size = 0x10000, scoped, tag = 'input window, operand 0']
    #allocation4 [shape = 's32[2]{0}', space=sflag, size = 0x8, scoped, tag = 'scoped memory for interpolate_forward.1']
    #allocation5 [shape = 's32[2]{0}', space=sflag, size = 0x8, scoped, tag = 'scoped memory for interpolate_forward.1']
    #allocation6 [shape = 'u8[16384]{0}', space=vmem, size = 0x4000, scoped, tag = 'input window, operand 1, single buffered']
    #allocation7 [shape = 's32[1]{0}', space=sflag, size = 0x4, scoped, tag = 'scoped memory for interpolate_forward.1']
    #allocation8 [shape = 'u8[114688]{0}', space=vmem, size = 0x1c000, scoped, tag = 'input window, operand 2, single buffered']
    #allocation9 [shape = 'u8[1835008]{0}', space=vmem, size = 0x1c0000, scoped, tag = 'output window, operand 0']
    %8 = vsyncpa [#allocation4], 0
    %s9 = scalar_lea.sflag [#allocation4], 1
    %10 = vsyncpa %s9, 0
    %11 = vsyncpa [#allocation7], 0
    %12 = vsyncpa [#allocation5], 0
    %s13 = scalar_lea.sflag [#allocation5], 1
    %14 = vsyncpa %s13, 0
    loop: start=0, step=1, limit=4
    $region2: #{interpolate_forward.1} parent=1 // loop_pre_header
      _
    $region3: #{interpolate_forward.1} parent=1 // loop_header
      %s16 = sphi 0, %s20
      %p17 = scmp.ge.s32.totalorder %s16, 4
      %s23 = sphi 0, %s35
      %s24 = sphi 0, %s31
      %s25 = sphi 0, %s23
      %s26 = sphi 0, %s24
      %s27 = sphi 0, %s25
      %s28 = sphi 0, %s26
      %s38 = sphi 0, %s40
      %s41 = sphi 0, %s38
      %s42 = sphi 0, %s41
      %s58 = sphi 0, %s42
      %s62 = sphi 0, %s62
      %s64 = sphi 0, %s62
      %s65 = sphi 0, %s64
      %s79 = sphi 0, %s65
      %s85 = sphi 0, %s87
      %s88 = sphi 0, %s85
      %s89 = sphi 0, %s88
      %s105 = sphi 0, %s89
      %s113 = sphi 0, %s115
      %s116 = sphi 0, %s113
      %s117 = sphi 0, %s116
      %s133 = sphi 0, %s117
    $region4: #{interpolate_forward.1} parent=1 // loop_header_branch
      %19 = sbr.rel (%p17) target = $region8
    $region5: #{interpolate_forward.1} parent=1 // loop_body
      %s21 = ssub.s32 %s16, 1
      %s22 = ssub.s32 %s16, 2
      %s29 = sadd.s32 1, %s24
      %p30 = scmp.ge.s32.totalorder %s29, 1
      %s31 = scalar_select %p30, 0, %s29
      %s32 = sadd.s32 1, %s23
      %s33 = scalar_select %p30, %s32, %s23
      %p34 = scmp.ge.s32.totalorder %s33, 2
      %s35 = scalar_select %p34, 0, %s33
      %s36 = ssub.s32 %s23, %s35
      %p37 = scmp.eq.s32.totalorder %s36, 0
      %s39 = sadd.s32 %s38, 1
      %s40 = scalar_select %p37, %s38, %s39
      %p43 = pneg %p37
      %p44 = scmp.eq.s32.totalorder %s16, 1
      %p45 = por %p43, %p44
      %p46 = scmp.ne.s32.totalorder %s38, %s41
      %p47 = scmp.eq.s32.totalorder %s16, 0
      %p48 = por %p46, %p47
      %p49 = scmp.ne.s32.totalorder %s38, %s41
      %p50 = scmp.eq.s32.totalorder %s21, 1
      %p51 = por %p49, %p50
      %p52 = scmp.ne.s32.totalorder %s41, %s42
      %p53 = scmp.eq.s32.totalorder %s21, 0
      %p54 = por %p52, %p53
      %p55 = scmp.ne.s32.totalorder %s41, %s42
      %p56 = scmp.eq.s32.totalorder %s22, 1
      %p57 = por %p55, %p56
      %p59 = scmp.ne.s32.totalorder %s42, %s58
      %p60 = scmp.eq.s32.totalorder %s22, 0
      %p61 = por %p59, %p60
      %s63 = sadd.s32 %s62, 1
      %p66 = scmp.eq.s32.totalorder %s16, 1
      %p67 = scmp.ne.s32.totalorder %s62, %s64
      %p68 = scmp.eq.s32.totalorder %s16, 0
      %p69 = por %p67, %p68
      %p70 = scmp.ne.s32.totalorder %s62, %s64
      %p71 = scmp.eq.s32.totalorder %s21, 1
      %p72 = por %p70, %p71
      %p73 = scmp.ne.s32.totalorder %s64, %s65
      %p74 = scmp.eq.s32.totalorder %s21, 0
      %p75 = por %p73, %p74
      %p76 = scmp.ne.s32.totalorder %s64, %s65
      %p77 = scmp.eq.s32.totalorder %s22, 1
      %p78 = por %p76, %p77
      %p80 = scmp.ne.s32.totalorder %s65, %s79
      %p81 = scmp.eq.s32.totalorder %s22, 0
      %p82 = por %p80, %p81
      %s83 = ssub.s32 %s24, %s31
      %p84 = scmp.eq.s32.totalorder %s83, 0
      %s86 = sadd.s32 %s85, 1
      %s87 = scalar_select %p84, %s85, %s86
      %p90 = pneg %p84
      %p91 = scmp.eq.s32.totalorder %s16, 1
      %p92 = por %p90, %p91
      %p93 = scmp.ne.s32.totalorder %s85, %s88
      %p94 = scmp.eq.s32.totalorder %s16, 0
      %p95 = por %p93, %p94
      %p96 = scmp.ne.s32.totalorder %s85, %s88
      %p97 = scmp.eq.s32.totalorder %s21, 1
      %p98 = por %p96, %p97
      %p99 = scmp.ne.s32.totalorder %s88, %s89
      %p100 = scmp.eq.s32.totalorder %s21, 0
      %p101 = por %p99, %p100
      %p102 = scmp.ne.s32.totalorder %s88, %s89
      %p103 = scmp.eq.s32.totalorder %s22, 1
      %p104 = por %p102, %p103
      %p106 = scmp.ne.s32.totalorder %s89, %s105
      %p107 = scmp.eq.s32.totalorder %s22, 0
      %p108 = por %p106, %p107
      %s109 = ssub.s32 %s23, %s35
      %s110 = ssub.s32 %s24, %s31
      %s111 = sor.u32 %s109, %s110
      %p112 = scmp.eq.s32.totalorder %s111, 0
      %s114 = sadd.s32 %s113, 1
      %s115 = scalar_select %p112, %s113, %s114
      %p118 = pneg %p112
      %p119 = scmp.eq.s32.totalorder %s16, 1
      %p120 = por %p118, %p119
      %p121 = scmp.ne.s32.totalorder %s113, %s116
      %p122 = scmp.eq.s32.totalorder %s16, 0
      %p123 = por %p121, %p122
      %p124 = scmp.ne.s32.totalorder %s113, %s116
      %p125 = scmp.eq.s32.totalorder %s21, 1
      %p126 = por %p124, %p125
      %p127 = scmp.ne.s32.totalorder %s116, %s117
      %p128 = scmp.eq.s32.totalorder %s21, 0
      %p129 = por %p127, %p128
      %p130 = scmp.ne.s32.totalorder %s116, %s117
      %p131 = scmp.eq.s32.totalorder %s22, 1
      %p132 = por %p130, %p131
      %p134 = scmp.ne.s32.totalorder %s117, %s133
      %p135 = scmp.eq.s32.totalorder %s22, 0
      %p136 = por %p134, %p135
      %p137 = scmp.le.s32.totalorder 1, %s16
      %p138 = scmp.lt.s32.totalorder %s16, 3
      %p139 = pnand %p137, %p138
      %p140 = pneg %p139
      // Predicated region
      $region9: #{interpolate_forward.1} parent=5 // pred_check
        _
      $region10: #{interpolate_forward.1} parent=5 // pred_check_branch
        %142 = sbr.rel (%p139) target = $region12
      $region11: #{interpolate_forward.1} parent=5 // pred_region
        %s143 = ssub.s32 %s16, 1
        // Predicated region
        $region13: #{interpolate_forward.1} parent=11 // pred_check
          %p144 = pneg %p75
        $region14: #{interpolate_forward.1} parent=11 // pred_check_branch
          %146 = sbr.rel (%p144) target = $region16
        $region15: #{interpolate_forward.1} parent=11 // pred_region
          %s148 = ssub.s32 512, 512
          %149 = vsyncadd [#allocation7], %s148
          %s150 = sshll.u32 [#allocation6], 4
          %s151 = int_to_ptr.vmem [resolvable:$true] %s150
          %156 = dma.hbm_to_vmem [thread:$0]  %s1, 512, %s151, [#allocation7], 256, 256, 16
        $region16: #{interpolate_forward.1} parent=11 // pred_fallthru
          _
        // Predicated region
        $region17: #{interpolate_forward.1} parent=11 // pred_check
          %p157 = pneg %p101
        $region18: #{interpolate_forward.1} parent=11 // pred_check_branch
          %159 = sbr.rel (%p157) target = $region20
        $region19: #{interpolate_forward.1} parent=11 // pred_region
          %s160 = smul.u32 28, %s26
          %s162 = ssub.s32 3584, 3584
          %163 = vsyncadd [#allocation7], %s162
          %s164 = smul.addr %s160, 128
          %s165 = scalar_lea.hbm %s2, %s164
          %s166 = sshll.u32 [#allocation8], 4
          %s167 = int_to_ptr.vmem [resolvable:$true] %s166
          %172 = dma.hbm_to_vmem [thread:$0]  %s165, 3584, %s167, [#allocation7], 128, 128, 8
        $region20: #{interpolate_forward.1} parent=11 // pred_fallthru
          _
      $region12: #{interpolate_forward.1} parent=5 // pred_fallthru
        _
      %p173 = scmp.lt.s32.totalorder %s16, 2
      // Predicated region
      $region21: #{interpolate_forward.1} parent=5 // pred_check
        %p174 = pneg %p173
      $region22: #{interpolate_forward.1} parent=5 // pred_check_branch
        %176 = sbr.rel (%p174) target = $region24
      $region23: #{interpolate_forward.1} parent=5 // pred_region
        // Predicated region
        $region25: #{interpolate_forward.1} parent=23 // pred_check
          %p177 = pneg %p48
        $region26: #{interpolate_forward.1} parent=23 // pred_check_branch
          %179 = sbr.rel (%p177) target = $region28
        $region27: #{interpolate_forward.1} parent=23 // pred_region
          %s180 = sand.u32 %s38, 1
          %s181 = scalar_lea.sflag [#allocation4], %s180
          %s182 = sand.u32 %s38, 1
          %s183 = smul.addr %s182, 64
          %s184 = scalar_lea.vmem [#allocation3], %s183
          %s185 = smul.u32 4, %s23
          %s187 = ssub.s32 1024, 1024
          %188 = vsyncadd %s181, %s187
          %s189 = smul.addr %s185, 2
          %s190 = smul.addr %s189, 128
          %s191 = scalar_lea.hbm %s0, %s190
          %s192 = sshll.u32 %s184, 4
          %s193 = int_to_ptr.vmem [resolvable:$true] %s192
          %198 = dma.hbm_to_vmem [thread:$0]  %s191, 1024, %s193, %s181, 128, 128, 8
        $region28: #{interpolate_forward.1} parent=23 // pred_fallthru
          _
      $region24: #{interpolate_forward.1} parent=5 // pred_fallthru
        _
      %p199 = scmp.le.s32.totalorder 1, %s16
      %p200 = scmp.lt.s32.totalorder %s16, 3
      %p201 = pnand %p199, %p200
      %p202 = pneg %p201
      // Predicated region
      $region29: #{interpolate_forward.1} parent=5 // pred_check
        _
      $region30: #{interpolate_forward.1} parent=5 // pred_check_branch
        %204 = sbr.rel (%p201) target = $region32
      $region31: #{interpolate_forward.1} parent=5 // pred_region
        %s205 = ssub.s32 %s16, 1
        %s206 = sand.u32 %s41, 1
        %s207 = scalar_lea.sflag [#allocation4], %s206
        %s208 = sand.u32 %s41, 1
        %s209 = smul.addr %s208, 64
        %s210 = scalar_lea.vmem [#allocation3], %s209
        // Predicated region
        $region33: #{interpolate_forward.1} parent=31 // pred_check
          %p211 = pneg %p54
        $region34: #{interpolate_forward.1} parent=31 // pred_check_branch
          %213 = sbr.rel (%p211) target = $region36
        $region35: #{interpolate_forward.1} parent=31 // pred_region
          %214 = dma.done %s207, 1024
        $region36: #{interpolate_forward.1} parent=31 // pred_fallthru
          _
        // Predicated region
        $region37: #{interpolate_forward.1} parent=31 // pred_check
          %p215 = pneg %p75
        $region38: #{interpolate_forward.1} parent=31 // pred_check_branch
          %217 = sbr.rel (%p215) target = $region40
        $region39: #{interpolate_forward.1} parent=31 // pred_region
          %218 = dma.done [#allocation7], 512
        $region40: #{interpolate_forward.1} parent=31 // pred_fallthru
          _
        // Predicated region
        $region41: #{interpolate_forward.1} parent=31 // pred_check
          %p219 = pneg %p101
        $region42: #{interpolate_forward.1} parent=31 // pred_check_branch
          %221 = sbr.rel (%p219) target = $region44
        $region43: #{interpolate_forward.1} parent=31 // pred_region
          %222 = dma.done [#allocation7], 3584
        $region44: #{interpolate_forward.1} parent=31 // pred_fallthru
          _
        %s223 = sand.u32 %s41, 1
        %s224 = scalar_lea.sflag [#allocation4], %s223
        %s225 = sand.u32 %s41, 1
        %s226 = smul.addr %s225, 64
        %s227 = scalar_lea.vmem [#allocation3], %s226
        %p228 = pneg %p54
        %p229 = pneg %p51
        %p230 = pneg %p75
        %p231 = pneg %p72
        %p232 = pneg %p101
        %p233 = pneg %p98
        %p234 = pneg %p129
        %p235 = pneg %p126
        %s236 = sand.u32 %s116, 1
        %s237 = scalar_lea.sflag [#allocation5], %s236
        %s238 = sand.u32 %s116, 1
        %s239 = smul.addr %s238, 1792
        %s240 = scalar_lea.vmem [#allocation9], %s239
        %s241 = smul.u32 4, %s25
        %s242 = smul.u32 28, %s26
        %s243 = smul.u32 4, %s25
        %s244 = smul.u32 28, %s26
        %p245 = scmp.eq.s32.totalorder %s26, 0
        // Predicated region
        $region45: #{interpolate_forward.1} parent=31 // pred_check
          %p246 = pneg %p245
        $region46: #{interpolate_forward.1} parent=31 // pred_check_branch
          %248 = sbr.rel (%p246) target = $region48
        $region47: #{interpolate_forward.1} parent=31 // pred_region
          %v249 = vld [vmem:[#allocation6] sm:$0xff]
          %v250 = vld [vmem:[#allocation6 + $0x8] sm:$0xff]
          %v251 = vld [vmem:[#allocation6 + $0x10] sm:$0xff]
          %v252 = vld [vmem:[#allocation6 + $0x18] sm:$0xff]
          loop: start=0, step=1, limit=4
          $region49: #{interpolate_forward.1} parent=47 // loop_pre_header
            _
          $region50: #{interpolate_forward.1} parent=47 // loop_header
            %s254 = sphi 0, %s258
            %p255 = scmp.ge.s32.totalorder %s254, 4
          $region51: #{interpolate_forward.1} parent=47 // loop_header_branch
            %257 = sbr.rel (%p255) target = $region55
          $region52: #{interpolate_forward.1} parent=47 // loop_body
            %s259 = smul.u32 %s254, 16
            %s260 = scalar_lea.vmem %s210, %s259 [#allocation3]
            %v261 = vld [vmem:[%s260] sm:$0xff]
            %v262 = vld [vmem:[%s260 + $0x8] sm:$0xff]
            %vm263 = vcmask 130048
            %v265 = vsel %vm263, %v261, 0
            %v268 = vsel %vm263, %v262, 0
            %270 = vmatprep.subr.mxu0 %v250
            %271 = vmatpush1.msra.mxu0 %v249
            %272 = vmatprep.subr.mxu0 %v252
            %273 = vmatpush1.msra.mxu0 %v251
            %274 = vmatprep.subr.mxu0 0.0
            %275 = vmatpush1.msra.mxu0 0.0
            %276 = vmatprep.subr.mxu0 0.0
            %277 = vmatpush1.msra.mxu0 0.0
            %278 = vmatprep.subr.mxu0 0.0
            %279 = vmatpush1.msra.mxu0 0.0
            %280 = vmatprep.subr.mxu0 0.0
            %281 = vmatpush1.msra.mxu0 0.0
            %282 = vmatprep.subr.mxu0 0.0
            %283 = vmatpush1.msra.mxu0 0.0
            %284 = vmatprep.subr.mxu0 0.0
            %285 = vmatpush1.msra.mxu0 0.0
            %286 = vmatprep.subr.mxu0 0.0
            %287 = vmatpush1.msra.mxu0 0.0
            %288 = vmatprep.subr.mxu0 0.0
            %289 = vmatpush1.msra.mxu0 0.0
            %290 = vmatprep.subr.mxu0 0.0
            %291 = vmatpush1.msra.mxu0 0.0
            %292 = vmatprep.subr.mxu0 0.0
            %293 = vmatpush1.msra.mxu0 0.0
            %294 = vmatprep.subr.mxu0 0.0
            %295 = vmatpush1.msra.mxu0 0.0
            %296 = vmatprep.subr.mxu0 0.0
            %297 = vmatpush1.msra.mxu0 0.0
            %298 = vmatprep.subr.mxu0 0.0
            %299 = vmatpush1.msra.mxu0 0.0
            %300 = vmatprep.subr.mxu0 0.0
            %301 = vmatpush1.msra.mxu0 0.0
            %302 = vmatprep.subr.mxu0 0.0
            %303 = vmatpush1.msra.mxu0 0.0
            %304 = vmatprep.subr.mxu0 0.0
            %305 = vmatpush1.msra.mxu0 0.0
            %306 = vmatprep.subr.mxu0 0.0
            %307 = vmatpush1.msra.mxu0 0.0
            %308 = vmatprep.subr.mxu0 0.0
            %309 = vmatpush1.msra.mxu0 0.0
            %310 = vmatprep.subr.mxu0 0.0
            %311 = vmatpush1.msra.mxu0 0.0
            %312 = vmatprep.subr.mxu0 0.0
            %313 = vmatpush1.msra.mxu0 0.0
            %314 = vmatprep.subr.mxu0 0.0
            %315 = vmatpush1.msra.mxu0 0.0
            %316 = vmatprep.subr.mxu0 0.0
            %317 = vmatpush1.msra.mxu0 0.0
            %318 = vmatprep.subr.mxu0 0.0
            %319 = vmatpush1.msra.mxu0 0.0
            %320 = vmatprep.subr.mxu0 0.0
            %321 = vmatpush1.msra.mxu0 0.0
            %322 = vmatprep.subr.mxu0 0.0
            %323 = vmatpush1.msra.mxu0 0.0
            %324 = vmatprep.subr.mxu0 0.0
            %325 = vmatpush1.msra.mxu0 0.0
            %326 = vmatprep.subr.mxu0 0.0
            %327 = vmatpush1.msra.mxu0 0.0
            %328 = vmatprep.subr.mxu0 0.0
            %329 = vmatpush1.msra.mxu0 0.0
            %330 = vmatprep.subr.mxu0 0.0
            %331 = vmatpush1.msra.mxu0 0.0
            %332 = vmatprep.subr.mxu0 0.0
            %333 = vmatpush1.msra.mxu0 0.0
            %334 = vmatprep.mubr.f32.mxu0 0.0
            %335 = vmatmul.mubr.f32.gmra.mrb[0].mxu0 %v265
            %v336 = vpop.f32.mrb[0].mxu0
            %v337 = vadd.f32 0.0, %v336
            %v338 = vpop.f32.mrb[0].mxu0
            %v339 = vadd.f32 0.0, %v338
            %340 = vmatprep.mubr.f32.mxu0 0.0
            %341 = vmatmul.mubr.f32.gmra.mrb[0].mxu0 %v268
            %v342 = vpop.f32.mrb[0].mxu0
            %v343 = vadd.f32 0.0, %v342
            %v344 = vpop.f32.mrb[0].mxu0
            %v345 = vadd.f32 0.0, %v344
            %346 = vdwg.mxu0
            %s347 = smul.u32 %s254, 4
            %s348 = smul.addr %s347, 8
            %s349 = scalar_lea.vmem [#allocation2], %s348
            %350 = vst [vmem:[%s349] sm:$0xff] %v337
            %vm351 = vcmask 785408
            %352 = vst.msk [vmem:[%s349 + $0x8] sm:$0xff] %vm351, %v339
            %353 = vst [vmem:[%s349 + $0x10] sm:$0xff] %v343
            %354 = vst.msk [vmem:[%s349 + $0x18] sm:$0xff] %vm351, %v345
          $region53: #{interpolate_forward.1} parent=47 // loop_footer
            %s258 = sadd.s32 1, %s254
          $region54: #{interpolate_forward.1} parent=47 // loop_footer_branch
            %253 = sbr.rel target = $region50
          $region55: #{interpolate_forward.1} parent=47 // loop_exit
            _
        $region48: #{interpolate_forward.1} parent=31 // pred_fallthru
          _
        %v355 = vld [vmem:[#allocation8] sm:$0xff]
        %v356 = vld [vmem:[#allocation8 + $0x8] sm:$0xff]
        %v357 = vld [vmem:[#allocation8 + $0x10] sm:$0xff]
        %v358 = vld [vmem:[#allocation8 + $0x18] sm:$0xff]
        %v359 = vld [vmem:[#allocation8 + $0x20] sm:$0xff]
        %v360 = vld [vmem:[#allocation8 + $0x28] sm:$0xff]
        %v361 = vld [vmem:[#allocation8 + $0x30] sm:$0xff]
        %v362 = vld [vmem:[#allocation8 + $0x38] sm:$0xff]
        %v363 = vld [vmem:[#allocation8 + $0x40] sm:$0xff]
        %v364 = vld [vmem:[#allocation8 + $0x48] sm:$0xff]
        %v365 = vld [vmem:[#allocation8 + $0x50] sm:$0xff]
        %v366 = vld [vmem:[#allocation8 + $0x58] sm:$0xff]
        %v367 = vld [vmem:[#allocation8 + $0x60] sm:$0xff]
        %v368 = vld [vmem:[#allocation8 + $0x68] sm:$0xff]
        %v369 = vld [vmem:[#allocation8 + $0x70] sm:$0xff]
        %v370 = vld [vmem:[#allocation8 + $0x78] sm:$0xff]
        %v371 = vld [vmem:[#allocation8 + $0x80] sm:$0xff]
        %v372 = vld [vmem:[#allocation8 + $0x88] sm:$0xff]
        %v373 = vld [vmem:[#allocation8 + $0x90] sm:$0xff]
        %v374 = vld [vmem:[#allocation8 + $0x98] sm:$0xff]
        %v375 = vld [vmem:[#allocation8 + $0xa0] sm:$0xff]
        %v376 = vld [vmem:[#allocation8 + $0xa8] sm:$0xff]
        %v377 = vld [vmem:[#allocation8 + $0xb0] sm:$0xff]
        %v378 = vld [vmem:[#allocation8 + $0xb8] sm:$0xff]
        %v379 = vld [vmem:[#allocation8 + $0xc0] sm:$0xff]
        %v380 = vld [vmem:[#allocation8 + $0xc8] sm:$0xff]
        %v381 = vld [vmem:[#allocation8 + $0xd0] sm:$0xff]
        %v382 = vld [vmem:[#allocation8 + $0xd8] sm:$0xff]
        loop: start=0, step=1, limit=4
        $region56: #{interpolate_forward.1} parent=31 // loop_pre_header
          _
        $region57: #{interpolate_forward.1} parent=31 // loop_header
          %s384 = sphi 0, %s388
          %p385 = scmp.ge.s32.totalorder %s384, 4
        $region58: #{interpolate_forward.1} parent=31 // loop_header_branch
          %387 = sbr.rel (%p385) target = $region62
        $region59: #{interpolate_forward.1} parent=31 // loop_body
          %s389 = smul.u32 %s384, 4
          %s390 = smul.addr %s389, 8
          %s391 = scalar_lea.vmem [#allocation2], %s390
          %v392 = vld [vmem:[%s391] sm:$0xff]
          %v393 = vld [vmem:[%s391 + $0x8] sm:$0xff]
          %v394 = vld [vmem:[%s391 + $0x10] sm:$0xff]
          %v395 = vld [vmem:[%s391 + $0x18] sm:$0xff]
          %vm396 = vcmask 130048
          %v398 = vsel %vm396, %v355, 0
          %v401 = vsel %vm396, %v356, 0
          %v404 = vsel %vm396, %v357, 0
          %v407 = vsel %vm396, %v358, 0
          %v410 = vsel %vm396, %v359, 0
          %v413 = vsel %vm396, %v360, 0
          %v416 = vsel %vm396, %v361, 0
          %v419 = vsel %vm396, %v362, 0
          %v422 = vsel %vm396, %v363, 0
          %v425 = vsel %vm396, %v364, 0
          %v428 = vsel %vm396, %v365, 0
          %v431 = vsel %vm396, %v366, 0
          %v434 = vsel %vm396, %v367, 0
          %v437 = vsel %vm396, %v368, 0
          %v440 = vsel %vm396, %v369, 0
          %v443 = vsel %vm396, %v370, 0
          %v446 = vsel %vm396, %v371, 0
          %v449 = vsel %vm396, %v372, 0
          %v452 = vsel %vm396, %v373, 0
          %v455 = vsel %vm396, %v374, 0
          %v458 = vsel %vm396, %v375, 0
          %v461 = vsel %vm396, %v376, 0
          %v464 = vsel %vm396, %v377, 0
          %v467 = vsel %vm396, %v378, 0
          %v470 = vsel %vm396, %v379, 0
          %v473 = vsel %vm396, %v380, 0
          %v476 = vsel %vm396, %v381, 0
          %v479 = vsel %vm396, %v382, 0
          %481 = vmatprep.subr.mxu0 %v393
          %482 = vmatpush1.msra.mxu0 %v392
          %483 = vmatprep.subr.mxu0 %v395
          %484 = vmatpush1.msra.mxu0 %v394
          %485 = vmatprep.subr.mxu0 0.0
          %486 = vmatpush1.msra.mxu0 0.0
          %487 = vmatprep.subr.mxu0 0.0
          %488 = vmatpush1.msra.mxu0 0.0
          %489 = vmatprep.subr.mxu0 0.0
          %490 = vmatpush1.msra.mxu0 0.0
          %491 = vmatprep.subr.mxu0 0.0
          %492 = vmatpush1.msra.mxu0 0.0
          %493 = vmatprep.subr.mxu0 0.0
          %494 = vmatpush1.msra.mxu0 0.0
          %495 = vmatprep.subr.mxu0 0.0
          %496 = vmatpush1.msra.mxu0 0.0
          %497 = vmatprep.subr.mxu0 0.0
          %498 = vmatpush1.msra.mxu0 0.0
          %499 = vmatprep.subr.mxu0 0.0
          %500 = vmatpush1.msra.mxu0 0.0
          %501 = vmatprep.subr.mxu0 0.0
          %502 = vmatpush1.msra.mxu0 0.0
          %503 = vmatprep.subr.mxu0 0.0
          %504 = vmatpush1.msra.mxu0 0.0
          %505 = vmatprep.subr.mxu0 0.0
          %506 = vmatpush1.msra.mxu0 0.0
          %507 = vmatprep.subr.mxu0 0.0
          %508 = vmatpush1.msra.mxu0 0.0
          %509 = vmatprep.subr.mxu0 0.0
          %510 = vmatpush1.msra.mxu0 0.0
          %511 = vmatprep.subr.mxu0 0.0
          %512 = vmatpush1.msra.mxu0 0.0
          %513 = vmatprep.subr.mxu0 0.0
          %514 = vmatpush1.msra.mxu0 0.0
          %515 = vmatprep.subr.mxu0 0.0
          %516 = vmatpush1.msra.mxu0 0.0
          %517 = vmatprep.subr.mxu0 0.0
          %518 = vmatpush1.msra.mxu0 0.0
          %519 = vmatprep.subr.mxu0 0.0
          %520 = vmatpush1.msra.mxu0 0.0
          %521 = vmatprep.subr.mxu0 0.0
          %522 = vmatpush1.msra.mxu0 0.0
          %523 = vmatprep.subr.mxu0 0.0
          %524 = vmatpush1.msra.mxu0 0.0
          %525 = vmatprep.subr.mxu0 0.0
          %526 = vmatpush1.msra.mxu0 0.0
          %527 = vmatprep.subr.mxu0 0.0
          %528 = vmatpush1.msra.mxu0 0.0
          %529 = vmatprep.subr.mxu0 0.0
          %530 = vmatpush1.msra.mxu0 0.0
          %531 = vmatprep.subr.mxu0 0.0
          %532 = vmatpush1.msra.mxu0 0.0
          %533 = vmatprep.subr.mxu0 0.0
          %534 = vmatpush1.msra.mxu0 0.0
          %535 = vmatprep.subr.mxu0 0.0
          %536 = vmatpush1.msra.mxu0 0.0
          %537 = vmatprep.subr.mxu0 0.0
          %538 = vmatpush1.msra.mxu0 0.0
          %539 = vmatprep.subr.mxu0 0.0
          %540 = vmatpush1.msra.mxu0 0.0
          %541 = vmatprep.subr.mxu0 0.0
          %542 = vmatpush1.msra.mxu0 0.0
          %543 = vmatprep.subr.mxu0 0.0
          %544 = vmatpush1.msra.mxu0 0.0
          %545 = vmatprep.mubr.f32.mxu0 0.0
          %546 = vmatmul.mubr.f32.gmra.mrb[0].mxu0 %v398
          %v547 = vpop.f32.mrb[0].mxu0
          %v548 = vadd.f32 0.0, %v547
          %v549 = vpop.f32.mrb[0].mxu0
          %v550 = vadd.f32 0.0, %v549
          %551 = vmatprep.mubr.f32.mxu0 0.0
          %552 = vmatmul.mubr.f32.gmra.mrb[0].mxu0 %v401
          %v553 = vpop.f32.mrb[0].mxu0
          %v554 = vadd.f32 0.0, %v553
          %v555 = vpop.f32.mrb[0].mxu0
          %v556 = vadd.f32 0.0, %v555
          %557 = vmatprep.mubr.f32.mxu0 0.0
          %558 = vmatmul.mubr.f32.gmra.mrb[0].mxu0 %v404
          %v559 = vpop.f32.mrb[0].mxu0
          %v560 = vadd.f32 0.0, %v559
          %v561 = vpop.f32.mrb[0].mxu0
          %v562 = vadd.f32 0.0, %v561
          %563 = vmatprep.mubr.f32.mxu0 0.0
          %564 = vmatmul.mubr.f32.gmra.mrb[0].mxu0 %v407
          %v565 = vpop.f32.mrb[0].mxu0
          %v566 = vadd.f32 0.0, %v565
          %v567 = vpop.f32.mrb[0].mxu0
          %v568 = vadd.f32 0.0, %v567
          %569 = vmatprep.mubr.f32.mxu0 0.0
          %570 = vmatmul.mubr.f32.gmra.mrb[0].mxu0 %v410
          %v571 = vpop.f32.mrb[0].mxu0
          %v572 = vadd.f32 0.0, %v571
          %v573 = vpop.f32.mrb[0].mxu0
          %v574 = vadd.f32 0.0, %v573
          %575 = vmatprep.mubr.f32.mxu0 0.0
          %576 = vmatmul.mubr.f32.gmra.mrb[0].mxu0 %v413
          %v577 = vpop.f32.mrb[0].mxu0
          %v578 = vadd.f32 0.0, %v577
          %v579 = vpop.f32.mrb[0].mxu0
          %v580 = vadd.f32 0.0, %v579
          %581 = vmatprep.mubr.f32.mxu0 0.0
          %582 = vmatmul.mubr.f32.gmra.mrb[0].mxu0 %v416
          %v583 = vpop.f32.mrb[0].mxu0
          %v584 = vadd.f32 0.0, %v583
          %v585 = vpop.f32.mrb[0].mxu0
          %v586 = vadd.f32 0.0, %v585
          %587 = vmatprep.mubr.f32.mxu0 0.0
          %588 = vmatmul.mubr.f32.gmra.mrb[0].mxu0 %v419
          %v589 = vpop.f32.mrb[0].mxu0
          %v590 = vadd.f32 0.0, %v589
          %v591 = vpop.f32.mrb[0].mxu0
          %v592 = vadd.f32 0.0, %v591
          %593 = vmatprep.mubr.f32.mxu0 0.0
          %594 = vmatmul.mubr.f32.gmra.mrb[0].mxu0 %v422
          %v595 = vpop.f32.mrb[0].mxu0
          %v596 = vadd.f32 0.0, %v595
          %v597 = vpop.f32.mrb[0].mxu0
          %v598 = vadd.f32 0.0, %v597
          %599 = vmatprep.mubr.f32.mxu0 0.0
          %600 = vmatmul.mubr.f32.gmra.mrb[0].mxu0 %v425
          %v601 = vpop.f32.mrb[0].mxu0
          %v602 = vadd.f32 0.0, %v601
          %v603 = vpop.f32.mrb[0].mxu0
          %v604 = vadd.f32 0.0, %v603
          %605 = vmatprep.mubr.f32.mxu0 0.0
          %606 = vmatmul.mubr.f32.gmra.mrb[0].mxu0 %v428
          %v607 = vpop.f32.mrb[0].mxu0
          %v608 = vadd.f32 0.0, %v607
          %v609 = vpop.f32.mrb[0].mxu0
          %v610 = vadd.f32 0.0, %v609
          %611 = vmatprep.mubr.f32.mxu0 0.0
          %612 = vmatmul.mubr.f32.gmra.mrb[0].mxu0 %v431
          %v613 = vpop.f32.mrb[0].mxu0
          %v614 = vadd.f32 0.0, %v613
          %v615 = vpop.f32.mrb[0].mxu0
          %v616 = vadd.f32 0.0, %v615
          %617 = vmatprep.mubr.f32.mxu0 0.0
          %618 = vmatmul.mubr.f32.gmra.mrb[0].mxu0 %v434
          %v619 = vpop.f32.mrb[0].mxu0
          %v620 = vadd.f32 0.0, %v619
          %v621 = vpop.f32.mrb[0].mxu0
          %v622 = vadd.f32 0.0, %v621
          %623 = vmatprep.mubr.f32.mxu0 0.0
          %624 = vmatmul.mubr.f32.gmra.mrb[0].mxu0 %v437
          %v625 = vpop.f32.mrb[0].mxu0
          %v626 = vadd.f32 0.0, %v625
          %v627 = vpop.f32.mrb[0].mxu0
          %v628 = vadd.f32 0.0, %v627
          %629 = vmatprep.mubr.f32.mxu0 0.0
          %630 = vmatmul.mubr.f32.gmra.mrb[0].mxu0 %v440
          %v631 = vpop.f32.mrb[0].mxu0
          %v632 = vadd.f32 0.0, %v631
          %v633 = vpop.f32.mrb[0].mxu0
          %v634 = vadd.f32 0.0, %v633
          %635 = vmatprep.mubr.f32.mxu0 0.0
          %636 = vmatmul.mubr.f32.gmra.mrb[0].mxu0 %v443
          %v637 = vpop.f32.mrb[0].mxu0
          %v638 = vadd.f32 0.0, %v637
          %v639 = vpop.f32.mrb[0].mxu0
          %v640 = vadd.f32 0.0, %v639
          %641 = vmatprep.mubr.f32.mxu0 0.0
          %642 = vmatmul.mubr.f32.gmra.mrb[0].mxu0 %v446
          %v643 = vpop.f32.mrb[0].mxu0
          %v644 = vadd.f32 0.0, %v643
          %v645 = vpop.f32.mrb[0].mxu0
          %v646 = vadd.f32 0.0, %v645
          %647 = vmatprep.mubr.f32.mxu0 0.0
          %648 = vmatmul.mubr.f32.gmra.mrb[0].mxu0 %v449
          %v649 = vpop.f32.mrb[0].mxu0
          %v650 = vadd.f32 0.0, %v649
          %v651 = vpop.f32.mrb[0].mxu0
          %v652 = vadd.f32 0.0, %v651
          %653 = vmatprep.mubr.f32.mxu0 0.0
          %654 = vmatmul.mubr.f32.gmra.mrb[0].mxu0 %v452
          %v655 = vpop.f32.mrb[0].mxu0
          %v656 = vadd.f32 0.0, %v655
          %v657 = vpop.f32.mrb[0].mxu0
          %v658 = vadd.f32 0.0, %v657
          %659 = vmatprep.mubr.f32.mxu0 0.0
          %660 = vmatmul.mubr.f32.gmra.mrb[0].mxu0 %v455
          %v661 = vpop.f32.mrb[0].mxu0
          %v662 = vadd.f32 0.0, %v661
          %v663 = vpop.f32.mrb[0].mxu0
          %v664 = vadd.f32 0.0, %v663
          %665 = vmatprep.mubr.f32.mxu0 0.0
          %666 = vmatmul.mubr.f32.gmra.mrb[0].mxu0 %v458
          %v667 = vpop.f32.mrb[0].mxu0
          %v668 = vadd.f32 0.0, %v667
          %v669 = vpop.f32.mrb[0].mxu0
          %v670 = vadd.f32 0.0, %v669
          %671 = vmatprep.mubr.f32.mxu0 0.0
          %672 = vmatmul.mubr.f32.gmra.mrb[0].mxu0 %v461
          %v673 = vpop.f32.mrb[0].mxu0
          %v674 = vadd.f32 0.0, %v673
          %v675 = vpop.f32.mrb[0].mxu0
          %v676 = vadd.f32 0.0, %v675
          %677 = vmatprep.mubr.f32.mxu0 0.0
          %678 = vmatmul.mubr.f32.gmra.mrb[0].mxu0 %v464
          %v679 = vpop.f32.mrb[0].mxu0
          %v680 = vadd.f32 0.0, %v679
          %v681 = vpop.f32.mrb[0].mxu0
          %v682 = vadd.f32 0.0, %v681
          %683 = vmatprep.mubr.f32.mxu0 0.0
          %684 = vmatmul.mubr.f32.gmra.mrb[0].mxu0 %v467
          %v685 = vpop.f32.mrb[0].mxu0
          %v686 = vadd.f32 0.0, %v685
          %v687 = vpop.f32.mrb[0].mxu0
          %v688 = vadd.f32 0.0, %v687
          %689 = vmatprep.mubr.f32.mxu0 0.0
          %690 = vmatmul.mubr.f32.gmra.mrb[0].mxu0 %v470
          %v691 = vpop.f32.mrb[0].mxu0
          %v692 = vadd.f32 0.0, %v691
          %v693 = vpop.f32.mrb[0].mxu0
          %v694 = vadd.f32 0.0, %v693
          %695 = vmatprep.mubr.f32.mxu0 0.0
          %696 = vmatmul.mubr.f32.gmra.mrb[0].mxu0 %v473
          %v697 = vpop.f32.mrb[0].mxu0
          %v698 = vadd.f32 0.0, %v697
          %v699 = vpop.f32.mrb[0].mxu0
          %v700 = vadd.f32 0.0, %v699
          %701 = vmatprep.mubr.f32.mxu0 0.0
          %702 = vmatmul.mubr.f32.gmra.mrb[0].mxu0 %v476
          %v703 = vpop.f32.mrb[0].mxu0
          %v704 = vadd.f32 0.0, %v703
          %v705 = vpop.f32.mrb[0].mxu0
          %v706 = vadd.f32 0.0, %v705
          %707 = vmatprep.mubr.f32.mxu0 0.0
          %708 = vmatmul.mubr.f32.gmra.mrb[0].mxu0 %v479
          %v709 = vpop.f32.mrb[0].mxu0
          %v710 = vadd.f32 0.0, %v709
          %v711 = vpop.f32.mrb[0].mxu0
          %v712 = vadd.f32 0.0, %v711
          %713 = vdwg.mxu0
          %s714 = smul.u32 %s384, 56
          %s715 = smul.addr %s714, 8
          %s716 = scalar_lea.vmem %s240, %s715 [#allocation9]
          %717 = vst [vmem:[%s716] sm:$0xff] %v548
          %vm718 = vcmask 785408
          %719 = vst.msk [vmem:[%s716 + $0x8] sm:$0xff] %vm718, %v550
          %720 = vst [vmem:[%s716 + $0x10] sm:$0xff] %v554
          %721 = vst.msk [vmem:[%s716 + $0x18] sm:$0xff] %vm718, %v556
          %722 = vst [vmem:[%s716 + $0x20] sm:$0xff] %v560
          %723 = vst.msk [vmem:[%s716 + $0x28] sm:$0xff] %vm718, %v562
          %724 = vst [vmem:[%s716 + $0x30] sm:$0xff] %v566
          %725 = vst.msk [vmem:[%s716 + $0x38] sm:$0xff] %vm718, %v568
          %726 = vst [vmem:[%s716 + $0x40] sm:$0xff] %v572
          %727 = vst.msk [vmem:[%s716 + $0x48] sm:$0xff] %vm718, %v574
          %728 = vst [vmem:[%s716 + $0x50] sm:$0xff] %v578
          %729 = vst.msk [vmem:[%s716 + $0x58] sm:$0xff] %vm718, %v580
          %730 = vst [vmem:[%s716 + $0x60] sm:$0xff] %v584
          %731 = vst.msk [vmem:[%s716 + $0x68] sm:$0xff] %vm718, %v586
          %732 = vst [vmem:[%s716 + $0x70] sm:$0xff] %v590
          %733 = vst.msk [vmem:[%s716 + $0x78] sm:$0xff] %vm718, %v592
          %734 = vst [vmem:[%s716 + $0x80] sm:$0xff] %v596
          %735 = vst.msk [vmem:[%s716 + $0x88] sm:$0xff] %vm718, %v598
          %736 = vst [vmem:[%s716 + $0x90] sm:$0xff] %v602
          %737 = vst.msk [vmem:[%s716 + $0x98] sm:$0xff] %vm718, %v604
          %738 = vst [vmem:[%s716 + $0xa0] sm:$0xff] %v608
          %739 = vst.msk [vmem:[%s716 + $0xa8] sm:$0xff] %vm718, %v610
          %740 = vst [vmem:[%s716 + $0xb0] sm:$0xff] %v614
          %741 = vst.msk [vmem:[%s716 + $0xb8] sm:$0xff] %vm718, %v616
          %742 = vst [vmem:[%s716 + $0xc0] sm:$0xff] %v620
          %743 = vst.msk [vmem:[%s716 + $0xc8] sm:$0xff] %vm718, %v622
          %744 = vst [vmem:[%s716 + $0xd0] sm:$0xff] %v626
          %745 = vst.msk [vmem:[%s716 + $0xd8] sm:$0xff] %vm718, %v628
          %746 = vst [vmem:[%s716 + $0xe0] sm:$0xff] %v632
          %747 = vst.msk [vmem:[%s716 + $0xe8] sm:$0xff] %vm718, %v634
          %748 = vst [vmem:[%s716 + $0xf0] sm:$0xff] %v638
          %749 = vst.msk [vmem:[%s716 + $0xf8] sm:$0xff] %vm718, %v640
          %750 = vst [vmem:[%s716 + $0x100] sm:$0xff] %v644
          %751 = vst.msk [vmem:[%s716 + $0x108] sm:$0xff] %vm718, %v646
          %752 = vst [vmem:[%s716 + $0x110] sm:$0xff] %v650
          %753 = vst.msk [vmem:[%s716 + $0x118] sm:$0xff] %vm718, %v652
          %754 = vst [vmem:[%s716 + $0x120] sm:$0xff] %v656
          %755 = vst.msk [vmem:[%s716 + $0x128] sm:$0xff] %vm718, %v658
          %756 = vst [vmem:[%s716 + $0x130] sm:$0xff] %v662
          %757 = vst.msk [vmem:[%s716 + $0x138] sm:$0xff] %vm718, %v664
          %758 = vst [vmem:[%s716 + $0x140] sm:$0xff] %v668
          %759 = vst.msk [vmem:[%s716 + $0x148] sm:$0xff] %vm718, %v670
          %760 = vst [vmem:[%s716 + $0x150] sm:$0xff] %v674
          %761 = vst.msk [vmem:[%s716 + $0x158] sm:$0xff] %vm718, %v676
          %762 = vst [vmem:[%s716 + $0x160] sm:$0xff] %v680
          %763 = vst.msk [vmem:[%s716 + $0x168] sm:$0xff] %vm718, %v682
          %764 = vst [vmem:[%s716 + $0x170] sm:$0xff] %v686
          %765 = vst.msk [vmem:[%s716 + $0x178] sm:$0xff] %vm718, %v688
          %766 = vst [vmem:[%s716 + $0x180] sm:$0xff] %v692
          %767 = vst.msk [vmem:[%s716 + $0x188] sm:$0xff] %vm718, %v694
          %768 = vst [vmem:[%s716 + $0x190] sm:$0xff] %v698
          %769 = vst.msk [vmem:[%s716 + $0x198] sm:$0xff] %vm718, %v700
          %770 = vst [vmem:[%s716 + $0x1a0] sm:$0xff] %v704
          %771 = vst.msk [vmem:[%s716 + $0x1a8] sm:$0xff] %vm718, %v706
          %772 = vst [vmem:[%s716 + $0x1b0] sm:$0xff] %v710
          %773 = vst.msk [vmem:[%s716 + $0x1b8] sm:$0xff] %vm718, %v712
        $region60: #{interpolate_forward.1} parent=31 // loop_footer
          %s388 = sadd.s32 1, %s384
        $region61: #{interpolate_forward.1} parent=31 // loop_footer_branch
          %383 = sbr.rel target = $region57
        $region62: #{interpolate_forward.1} parent=31 // loop_exit
          _
        %s774 = sand.u32 %s116, 1
        %s775 = scalar_lea.sflag [#allocation5], %s774
        %s776 = sand.u32 %s116, 1
        %s777 = smul.addr %s776, 1792
        %s778 = scalar_lea.vmem [#allocation9], %s777
        // Predicated region
        $region63: #{interpolate_forward.1} parent=31 // pred_check
          %p779 = pneg %p126
        $region64: #{interpolate_forward.1} parent=31 // pred_check_branch
          %781 = sbr.rel (%p779) target = $region66
        $region65: #{interpolate_forward.1} parent=31 // pred_region
          %s782 = smul.u32 4, %s25
          %s783 = smul.u32 28, %s26
          %s785 = ssub.s32 28672, 28672
          %786 = vsyncadd %s775, %s785
          %s787 = smul.addr %s783, 2
          %s788 = smul.addr %s782, 56
          %s789 = sadd.s32 %s787, %s788
          %s790 = smul.addr %s789, 128
          %s791 = scalar_lea.hbm %s3, %s790
          %s792 = sshll.u32 %s778, 4
          %s793 = int_to_ptr.vmem [resolvable:$true] %s792
          %798 = dma.vmem_to_hbm [thread:$0]  %s793, 28672, %s791, %s775, 256, 256, 16
        $region66: #{interpolate_forward.1} parent=31 // pred_fallthru
          _
      $region32: #{interpolate_forward.1} parent=5 // pred_fallthru
        _
      %p799 = scmp.le.s32.totalorder 2, %s16
      // Predicated region
      $region67: #{interpolate_forward.1} parent=5 // pred_check
        %p800 = pneg %p799
      $region68: #{interpolate_forward.1} parent=5 // pred_check_branch
        %802 = sbr.rel (%p800) target = $region70
      $region69: #{interpolate_forward.1} parent=5 // pred_region
        %s803 = ssub.s32 %s16, 2
        // Predicated region
        $region71: #{interpolate_forward.1} parent=69 // pred_check
          %p804 = pneg %p132
        $region72: #{interpolate_forward.1} parent=69 // pred_check_branch
          %806 = sbr.rel (%p804) target = $region74
        $region73: #{interpolate_forward.1} parent=69 // pred_region
          %s807 = sand.u32 %s117, 1
          %s808 = scalar_lea.sflag [#allocation5], %s807
          %s809 = sand.u32 %s117, 1
          %s810 = smul.addr %s809, 1792
          %s811 = scalar_lea.vmem [#allocation9], %s810
          %812 = dma.done %s808, 28672
        $region74: #{interpolate_forward.1} parent=69 // pred_fallthru
          _
      $region70: #{interpolate_forward.1} parent=5 // pred_fallthru
        _
    $region6: #{interpolate_forward.1} parent=1 // loop_footer
      %s20 = sadd.s32 1, %s16
    $region7: #{interpolate_forward.1} parent=1 // loop_footer_branch
      %15 = sbr.rel target = $region3
    $region8: #{interpolate_forward.1} parent=1 // loop_exit
      _
    %813 = vsyncpa [#allocation4], 1
    %s814 = scalar_lea.sflag [#allocation4], 1
    %815 = vsyncpa %s814, 1
    %816 = vsyncpa [#allocation7], 1
    %817 = vsyncpa [#allocation5], 1
    %s818 = scalar_lea.sflag [#allocation5], 1
    %819 = vsyncpa %s818, 1

</llo_original>
